<compile_context>
chip_gen: v6e
topology: v6e:2x2x1
jax: 0.10.0
libtpu: 0.0.40
codegen_flags: <defaults>
</compile_context>

<pallas_src>
import functools

import jax
import jax.numpy as jnp
from jax.experimental import pallas as pl
from jax.experimental.pallas import tpu as pltpu


def _make_kernel(B, L, B_pad):
    """Fused gather + tanh-RNN recurrence + classifier (static B, L)."""

    def kernel(ids_ref, eproj_ref, whh_t_ref, wc_t_ref, bc_ref, out_ref, xt_ref):
        # ids_ref:   (B*L,)     int32 SMEM  -- row-major: ids_ref[b*L + t]
        # eproj_ref: (V, 1, D)  f32 VMEM    -- emb @ W_ih^T + (b_ih + b_hh)
        # whh_t_ref: (D, D)     f32 VMEM    -- W_hh^T
        # wc_t_ref:  (D, Cpad)  f32 VMEM    -- classifier weight^T, lane padded
        # bc_ref:    (1, Cpad)  f32 VMEM    -- classifier bias, lane padded
        # out_ref:   (B_pad, Cpad) f32
        # xt_ref:    (B_pad, D) f32 VMEM scratch -- per-step gathered inputs

        # Hoist weight loads out of the unrolled recurrence (one vld each).
        whh = whh_t_ref[...]
        wc = wc_t_ref[...]
        bc = bc_ref[...]

        # Zero the staging buffer once so padded batch rows stay well defined.
        xt_ref[...] = jnp.zeros_like(xt_ref)

        def gather_step(t):
            # In-kernel embedding gather: scalar-indexed row loads from VMEM.
            for b in range(B):
                idx = ids_ref[b * L + t]
                xt_ref[pl.ds(b, 1), :] = eproj_ref[idx]
            return xt_ref[...]

        # h_0 = 0 (nn.RNN default)  =>  h_1 = tanh(x_proj[0]) with no matmul.
        h = jnp.tanh(gather_step(0))

        # Static unroll: one MXU matmul (h @ W_hh^T) + add + tanh per step.
        for t in range(1, L):
            pre = gather_step(t) + jnp.dot(h, whh,
                                           preferred_element_type=jnp.float32)
            h = jnp.tanh(pre)

        # Classifier on final hidden state (== hidden.squeeze() in torch).
        out_ref[...] = (jnp.dot(h, wc, preferred_element_type=jnp.float32)
                        + bc).astype(out_ref.dtype)

    return kernel


def prepare_params(params):
    """One-time weight folding / padding. Keep OUT of the per-call hot path."""
    emb = params["embedding"].astype(jnp.float32)   # (V, D)
    w_ih = params["w_ih"].astype(jnp.float32)       # (D, D) torch layout (hid, in)
    w_hh = params["w_hh"].astype(jnp.float32)       # (D, D)
    b_ih = params["b_ih"].astype(jnp.float32)       # (D,)
    b_hh = params["b_hh"].astype(jnp.float32)       # (D,)
    w_c = params["w_c"].astype(jnp.float32)         # (C, D) torch Linear (out, in)
    b_c = params["b_c"].astype(jnp.float32)         # (C,)

    V, D = emb.shape
    C = w_c.shape[0]
    C_pad = max(128, ((C + 127) // 128) * 128)      # lane-dense output width

    # Fold the input projection + both biases into the embedding table: each
    # vocab row is projected once and reused for every token occurrence.
    e_proj = emb @ w_ih.T + (b_ih + b_hh)           # (V, D)

    wc_t_pad = jnp.zeros((D, C_pad), jnp.float32).at[:, :C].set(w_c.T)
    bc_pad = jnp.zeros((1, C_pad), jnp.float32).at[:, :C].set(b_c[None, :])

    return {
        "e_proj": e_proj.reshape(V, 1, D),          # leading dim indexed in-kernel
        "whh_t": w_hh.T,
        "wc_t_pad": wc_t_pad,
        "bc_pad": bc_pad,
    }


@functools.partial(jax.jit, static_argnums=(2,))
def torch_model_forward(x_ids, prep, num_classes):
    """x_ids: (B, L) int token ids. Returns logits (B, num_classes)."""
    B, L = x_ids.shape
    V, _, D = prep["e_proj"].shape
    C_pad = prep["wc_t_pad"].shape[1]
    B_pad = max(8, ((B + 7) // 8) * 8)              # unmasked sublane stores

    ids_flat = x_ids.astype(jnp.int32).reshape(-1)  # (B*L,), row-major

    cost = pl.CostEstimate(
        flops=2 * (L - 1) * B_pad * D * D + 2 * B_pad * D * C_pad,
        transcendentals=L * B_pad * D,
        bytes_accessed=4 * (V * D + D * D + D * C_pad + C_pad
                            + B_pad * C_pad + B * L),
    )

    grid_spec = pltpu.PrefetchScalarGridSpec(
        num_scalar_prefetch=1,                      # ids -> SMEM before kernel
        grid=(),
        in_specs=[
            pl.BlockSpec(memory_space=pltpu.MemorySpace.VMEM),  # e_proj
            pl.BlockSpec(memory_space=pltpu.MemorySpace.VMEM),  # W_hh^T
            pl.BlockSpec(memory_space=pltpu.MemorySpace.VMEM),  # W_c^T (padded)
            pl.BlockSpec(memory_space=pltpu.MemorySpace.VMEM),  # b_c (padded)
        ],
        out_specs=pl.BlockSpec(memory_space=pltpu.MemorySpace.VMEM),
        scratch_shapes=[pltpu.VMEM((B_pad, D), jnp.float32)],
    )

    out_pad = pl.pallas_call(
        _make_kernel(B, L, B_pad),
        out_shape=jax.ShapeDtypeStruct((B_pad, C_pad), jnp.float32),
        grid_spec=grid_spec,
        cost_estimate=cost,
    )(ids_flat, prep["e_proj"], prep["whh_t"], prep["wc_t_pad"], prep["bc_pad"])

    return out_pad[:B, :num_classes]


def reference_forward(x_ids, params):
    """Pure-JAX reference matching the PyTorch forward (y=None branch)."""
    emb = params["embedding"]
    x = emb[x_ids]                                  # (B, L, D)
    B, L, D = x.shape
    h = jnp.zeros((B, D), jnp.float32)
    for t in range(L):
        h = jnp.tanh(x[:, t] @ params["w_ih"].T + params["b_ih"]
                     + h @ params["w_hh"].T + params["b_hh"])
    return h @ params["w_c"].T + params["b_c"]


def init_params(key, vocab_size, vector_dim, sentence_length):
    keys = jax.random.split(key, 7)
    D = vector_dim
    C = sentence_length + 1
    scale = 1.0 / jnp.sqrt(D)
    return {
        "embedding": jax.random.normal(keys[0], (vocab_size, D), jnp.float32),
        "w_ih": jax.random.uniform(keys[1], (D, D), jnp.float32, -scale, scale),
        "w_hh": jax.random.uniform(keys[2], (D, D), jnp.float32, -scale, scale),
        "b_ih": jax.random.uniform(keys[3], (D,), jnp.float32, -scale, scale),
        "b_hh": jax.random.uniform(keys[4], (D,), jnp.float32, -scale, scale),
        "w_c": jax.random.uniform(keys[5], (C, D), jnp.float32, -scale, scale),
        "b_c": jax.random.uniform(keys[6], (C,), jnp.float32, -scale, scale),
    }


if __name__ == "__main__":
    # small shapes consistent with the module: vector_dim=32, sentence_length=8
    vocab_size = 30
    vector_dim = 32
    sentence_length = 8
    batch = 2
    num_classes = sentence_length + 1

    key = jax.random.PRNGKey(0)
    pkey, xkey = jax.random.split(key)
    params = init_params(pkey, vocab_size, vector_dim, sentence_length)

    # One-time weight folding / padding (kept out of the per-call hot path).
    prep = prepare_params(params)
    jax.block_until_ready(prep)

    x_ids = jax.random.randint(xkey, (batch, sentence_length), 0, vocab_size,
                               dtype=jnp.int32)

    logits = torch_model_forward(x_ids, prep, num_classes)
    jax.block_until_ready(logits)

    assert logits.shape == (batch, num_classes)

    ref = reference_forward(x_ids, params)
    assert jnp.allclose(logits, ref, atol=1e-3, rtol=1e-3), (
        float(jnp.max(jnp.abs(logits - ref))))

    # TODO(synk): training path (cross_entropy loss when y is given) is not
    # implemented; only the inference branch (return y_pred) is reproduced.
    print("KERNEL_OK")
</pallas_src>

<mosaic_0001>
module attributes {stable_mosaic.version = 11 : i64} {
  func.func @kernel(%arg0: memref<16xi32, #tpu.memory_space<smem>>, %arg1: memref<30x1x32xf32, #tpu.memory_space<vmem>>, %arg2: memref<32x32xf32, #tpu.memory_space<vmem>>, %arg3: memref<32x128xf32, #tpu.memory_space<vmem>>, %arg4: memref<1x128xf32, #tpu.memory_space<vmem>>, %arg5: memref<8x128xf32, #tpu.memory_space<vmem>>, %arg6: memref<8x32xf32, #tpu.memory_space<vmem>>) attributes {dimension_semantics = [], scalar_prefetch = 1 : i64, scratch_operands = 1 : i64, tpu.core_type = #tpu.core_type<tc>} {
    %c0 = arith.constant 0 : index
    %c0_0 = arith.constant 0 : index
    %0 = vector.load %arg2[%c0, %c0_0] : memref<32x32xf32, #tpu.memory_space<vmem>>, vector<32x32xf32>
    %c0_1 = arith.constant 0 : index
    %c0_2 = arith.constant 0 : index
    %1 = vector.load %arg3[%c0_1, %c0_2] : memref<32x128xf32, #tpu.memory_space<vmem>>, vector<32x128xf32>
    %c0_3 = arith.constant 0 : index
    %c0_4 = arith.constant 0 : index
    %2 = vector.load %arg4[%c0_3, %c0_4] : memref<1x128xf32, #tpu.memory_space<vmem>>, vector<1x128xf32>
    %cst = arith.constant 0.000000e+00 : f32
    %3 = vector.broadcast %cst : f32 to vector<8x32xf32>
    %c0_5 = arith.constant 0 : index
    %c0_6 = arith.constant 0 : index
    %4 = vector.load %arg6[%c0_5, %c0_6] : memref<8x32xf32, #tpu.memory_space<vmem>>, vector<8x32xf32>
    tpu.vector_store %arg6[%c0_5, %c0_6], %3 {strides = array<i32>} : memref<8x32xf32, #tpu.memory_space<vmem>>, vector<8x32xf32>,
    %c0_7 = arith.constant 0 : index
    %5 = memref.load %arg0[%c0_7] : memref<16xi32, #tpu.memory_space<smem>>
    %6 = arith.index_cast %5 : i32 to index
    %c0_8 = arith.constant 0 : index
    %c0_9 = arith.constant 0 : index
    %7 = vector.load %arg1[%6, %c0_8, %c0_9] : memref<30x1x32xf32, #tpu.memory_space<vmem>>, vector<1x1x32xf32>
    %8 = vector.shape_cast %7 : vector<1x1x32xf32> to vector<1x32xf32>
    %c0_10 = arith.constant 0 : index
    %c0_11 = arith.constant 0 : index
    %9 = vector.load %arg6[%c0_10, %c0_11] : memref<8x32xf32, #tpu.memory_space<vmem>>, vector<1x32xf32>
    tpu.vector_store %arg6[%c0_10, %c0_11], %8 {strides = array<i32>} : memref<8x32xf32, #tpu.memory_space<vmem>>, vector<1x32xf32>,
    %c8 = arith.constant 8 : index
    %10 = memref.load %arg0[%c8] : memref<16xi32, #tpu.memory_space<smem>>
    %11 = arith.index_cast %10 : i32 to index
    %c0_12 = arith.constant 0 : index
    %c0_13 = arith.constant 0 : index
    %12 = vector.load %arg1[%11, %c0_12, %c0_13] : memref<30x1x32xf32, #tpu.memory_space<vmem>>, vector<1x1x32xf32>
    %13 = vector.shape_cast %12 : vector<1x1x32xf32> to vector<1x32xf32>
    %c1 = arith.constant 1 : index
    %c0_14 = arith.constant 0 : index
    %14 = vector.load %arg6[%c1, %c0_14] : memref<8x32xf32, #tpu.memory_space<vmem>>, vector<1x32xf32>
    tpu.vector_store %arg6[%c1, %c0_14], %13 {strides = array<i32>} : memref<8x32xf32, #tpu.memory_space<vmem>>, vector<1x32xf32>,
    %c0_15 = arith.constant 0 : index
    %c0_16 = arith.constant 0 : index
    %15 = vector.load %arg6[%c0_15, %c0_16] : memref<8x32xf32, #tpu.memory_space<vmem>>, vector<8x32xf32>
    %16 = math.tanh %15 : vector<8x32xf32>
    %c1_17 = arith.constant 1 : index
    %17 = memref.load %arg0[%c1_17] : memref<16xi32, #tpu.memory_space<smem>>
    %18 = arith.index_cast %17 : i32 to index
    %c0_18 = arith.constant 0 : index
    %c0_19 = arith.constant 0 : index
    %19 = vector.load %arg1[%18, %c0_18, %c0_19] : memref<30x1x32xf32, #tpu.memory_space<vmem>>, vector<1x1x32xf32>
    %20 = vector.shape_cast %19 : vector<1x1x32xf32> to vector<1x32xf32>
    %c0_20 = arith.constant 0 : index
    %c0_21 = arith.constant 0 : index
    %21 = vector.load %arg6[%c0_20, %c0_21] : memref<8x32xf32, #tpu.memory_space<vmem>>, vector<1x32xf32>
    tpu.vector_store %arg6[%c0_20, %c0_21], %20 {strides = array<i32>} : memref<8x32xf32, #tpu.memory_space<vmem>>, vector<1x32xf32>,
    %c9 = arith.constant 9 : index
    %22 = memref.load %arg0[%c9] : memref<16xi32, #tpu.memory_space<smem>>
    %23 = arith.index_cast %22 : i32 to index
    %c0_22 = arith.constant 0 : index
    %c0_23 = arith.constant 0 : index
    %24 = vector.load %arg1[%23, %c0_22, %c0_23] : memref<30x1x32xf32, #tpu.memory_space<vmem>>, vector<1x1x32xf32>
    %25 = vector.shape_cast %24 : vector<1x1x32xf32> to vector<1x32xf32>
    %c1_24 = arith.constant 1 : index
    %c0_25 = arith.constant 0 : index
    %26 = vector.load %arg6[%c1_24, %c0_25] : memref<8x32xf32, #tpu.memory_space<vmem>>, vector<1x32xf32>
    tpu.vector_store %arg6[%c1_24, %c0_25], %25 {strides = array<i32>} : memref<8x32xf32, #tpu.memory_space<vmem>>, vector<1x32xf32>,
    %c0_26 = arith.constant 0 : index
    %c0_27 = arith.constant 0 : index
    %27 = vector.load %arg6[%c0_26, %c0_27] : memref<8x32xf32, #tpu.memory_space<vmem>>, vector<8x32xf32>
    %cst_28 = arith.constant dense<0.000000e+00> : vector<8x32xf32>
    %28 = tpu.matmul %16, %0, %cst_28 {dimension_numbers = #tpu.dot_dimension_numbers<[1], [0], [0], [1], [0, 0, 1, 1], [], []>} : vector<8x32xf32>, vector<32x32xf32>, vector<8x32xf32> -> vector<8x32xf32>
    %29 = arith.addf %27, %28 : vector<8x32xf32>
    %30 = math.tanh %29 : vector<8x32xf32>
    %c2 = arith.constant 2 : index
    %31 = memref.load %arg0[%c2] : memref<16xi32, #tpu.memory_space<smem>>
    %32 = arith.index_cast %31 : i32 to index
    %c0_29 = arith.constant 0 : index
    %c0_30 = arith.constant 0 : index
    %33 = vector.load %arg1[%32, %c0_29, %c0_30] : memref<30x1x32xf32, #tpu.memory_space<vmem>>, vector<1x1x32xf32>
    %34 = vector.shape_cast %33 : vector<1x1x32xf32> to vector<1x32xf32>
    %c0_31 = arith.constant 0 : index
    %c0_32 = arith.constant 0 : index
    %35 = vector.load %arg6[%c0_31, %c0_32] : memref<8x32xf32, #tpu.memory_space<vmem>>, vector<1x32xf32>
    tpu.vector_store %arg6[%c0_31, %c0_32], %34 {strides = array<i32>} : memref<8x32xf32, #tpu.memory_space<vmem>>, vector<1x32xf32>,
    %c10 = arith.constant 10 : index
    %36 = memref.load %arg0[%c10] : memref<16xi32, #tpu.memory_space<smem>>
    %37 = arith.index_cast %36 : i32 to index
    %c0_33 = arith.constant 0 : index
    %c0_34 = arith.constant 0 : index
    %38 = vector.load %arg1[%37, %c0_33, %c0_34] : memref<30x1x32xf32, #tpu.memory_space<vmem>>, vector<1x1x32xf32>
    %39 = vector.shape_cast %38 : vector<1x1x32xf32> to vector<1x32xf32>
    %c1_35 = arith.constant 1 : index
    %c0_36 = arith.constant 0 : index
    %40 = vector.load %arg6[%c1_35, %c0_36] : memref<8x32xf32, #tpu.memory_space<vmem>>, vector<1x32xf32>
    tpu.vector_store %arg6[%c1_35, %c0_36], %39 {strides = array<i32>} : memref<8x32xf32, #tpu.memory_space<vmem>>, vector<1x32xf32>,
    %c0_37 = arith.constant 0 : index
    %c0_38 = arith.constant 0 : index
    %41 = vector.load %arg6[%c0_37, %c0_38] : memref<8x32xf32, #tpu.memory_space<vmem>>, vector<8x32xf32>
    %cst_39 = arith.constant dense<0.000000e+00> : vector<8x32xf32>
    %42 = tpu.matmul %30, %0, %cst_39 {dimension_numbers = #tpu.dot_dimension_numbers<[1], [0], [0], [1], [0, 0, 1, 1], [], []>} : vector<8x32xf32>, vector<32x32xf32>, vector<8x32xf32> -> vector<8x32xf32>
    %43 = arith.addf %41, %42 : vector<8x32xf32>
    %44 = math.tanh %43 : vector<8x32xf32>
    %c3 = arith.constant 3 : index
    %45 = memref.load %arg0[%c3] : memref<16xi32, #tpu.memory_space<smem>>
    %46 = arith.index_cast %45 : i32 to index
    %c0_40 = arith.constant 0 : index
    %c0_41 = arith.constant 0 : index
    %47 = vector.load %arg1[%46, %c0_40, %c0_41] : memref<30x1x32xf32, #tpu.memory_space<vmem>>, vector<1x1x32xf32>
    %48 = vector.shape_cast %47 : vector<1x1x32xf32> to vector<1x32xf32>
    %c0_42 = arith.constant 0 : index
    %c0_43 = arith.constant 0 : index
    %49 = vector.load %arg6[%c0_42, %c0_43] : memref<8x32xf32, #tpu.memory_space<vmem>>, vector<1x32xf32>
    tpu.vector_store %arg6[%c0_42, %c0_43], %48 {strides = array<i32>} : memref<8x32xf32, #tpu.memory_space<vmem>>, vector<1x32xf32>,
    %c11 = arith.constant 11 : index
    %50 = memref.load %arg0[%c11] : memref<16xi32, #tpu.memory_space<smem>>
    %51 = arith.index_cast %50 : i32 to index
    %c0_44 = arith.constant 0 : index
    %c0_45 = arith.constant 0 : index
    %52 = vector.load %arg1[%51, %c0_44, %c0_45] : memref<30x1x32xf32, #tpu.memory_space<vmem>>, vector<1x1x32xf32>
    %53 = vector.shape_cast %52 : vector<1x1x32xf32> to vector<1x32xf32>
    %c1_46 = arith.constant 1 : index
    %c0_47 = arith.constant 0 : index
    %54 = vector.load %arg6[%c1_46, %c0_47] : memref<8x32xf32, #tpu.memory_space<vmem>>, vector<1x32xf32>
    tpu.vector_store %arg6[%c1_46, %c0_47], %53 {strides = array<i32>} : memref<8x32xf32, #tpu.memory_space<vmem>>, vector<1x32xf32>,
    %c0_48 = arith.constant 0 : index
    %c0_49 = arith.constant 0 : index
    %55 = vector.load %arg6[%c0_48, %c0_49] : memref<8x32xf32, #tpu.memory_space<vmem>>, vector<8x32xf32>
    %cst_50 = arith.constant dense<0.000000e+00> : vector<8x32xf32>
    %56 = tpu.matmul %44, %0, %cst_50 {dimension_numbers = #tpu.dot_dimension_numbers<[1], [0], [0], [1], [0, 0, 1, 1], [], []>} : vector<8x32xf32>, vector<32x32xf32>, vector<8x32xf32> -> vector<8x32xf32>
    %57 = arith.addf %55, %56 : vector<8x32xf32>
    %58 = math.tanh %57 : vector<8x32xf32>
    %c4 = arith.constant 4 : index
    %59 = memref.load %arg0[%c4] : memref<16xi32, #tpu.memory_space<smem>>
    %60 = arith.index_cast %59 : i32 to index
    %c0_51 = arith.constant 0 : index
    %c0_52 = arith.constant 0 : index
    %61 = vector.load %arg1[%60, %c0_51, %c0_52] : memref<30x1x32xf32, #tpu.memory_space<vmem>>, vector<1x1x32xf32>
    %62 = vector.shape_cast %61 : vector<1x1x32xf32> to vector<1x32xf32>
    %c0_53 = arith.constant 0 : index
    %c0_54 = arith.constant 0 : index
    %63 = vector.load %arg6[%c0_53, %c0_54] : memref<8x32xf32, #tpu.memory_space<vmem>>, vector<1x32xf32>
    tpu.vector_store %arg6[%c0_53, %c0_54], %62 {strides = array<i32>} : memref<8x32xf32, #tpu.memory_space<vmem>>, vector<1x32xf32>,
    %c12 = arith.constant 12 : index
    %64 = memref.load %arg0[%c12] : memref<16xi32, #tpu.memory_space<smem>>
    %65 = arith.index_cast %64 : i32 to index
    %c0_55 = arith.constant 0 : index
    %c0_56 = arith.constant 0 : index
    %66 = vector.load %arg1[%65, %c0_55, %c0_56] : memref<30x1x32xf32, #tpu.memory_space<vmem>>, vector<1x1x32xf32>
    %67 = vector.shape_cast %66 : vector<1x1x32xf32> to vector<1x32xf32>
    %c1_57 = arith.constant 1 : index
    %c0_58 = arith.constant 0 : index
    %68 = vector.load %arg6[%c1_57, %c0_58] : memref<8x32xf32, #tpu.memory_space<vmem>>, vector<1x32xf32>
    tpu.vector_store %arg6[%c1_57, %c0_58], %67 {strides = array<i32>} : memref<8x32xf32, #tpu.memory_space<vmem>>, vector<1x32xf32>,
    %c0_59 = arith.constant 0 : index
    %c0_60 = arith.constant 0 : index
    %69 = vector.load %arg6[%c0_59, %c0_60] : memref<8x32xf32, #tpu.memory_space<vmem>>, vector<8x32xf32>
    %cst_61 = arith.constant dense<0.000000e+00> : vector<8x32xf32>
    %70 = tpu.matmul %58, %0, %cst_61 {dimension_numbers = #tpu.dot_dimension_numbers<[1], [0], [0], [1], [0, 0, 1, 1], [], []>} : vector<8x32xf32>, vector<32x32xf32>, vector<8x32xf32> -> vector<8x32xf32>
    %71 = arith.addf %69, %70 : vector<8x32xf32>
    %72 = math.tanh %71 : vector<8x32xf32>
    %c5 = arith.constant 5 : index
    %73 = memref.load %arg0[%c5] : memref<16xi32, #tpu.memory_space<smem>>
    %74 = arith.index_cast %73 : i32 to index
    %c0_62 = arith.constant 0 : index
    %c0_63 = arith.constant 0 : index
    %75 = vector.load %arg1[%74, %c0_62, %c0_63] : memref<30x1x32xf32, #tpu.memory_space<vmem>>, vector<1x1x32xf32>
    %76 = vector.shape_cast %75 : vector<1x1x32xf32> to vector<1x32xf32>
    %c0_64 = arith.constant 0 : index
    %c0_65 = arith.constant 0 : index
    %77 = vector.load %arg6[%c0_64, %c0_65] : memref<8x32xf32, #tpu.memory_space<vmem>>, vector<1x32xf32>
    tpu.vector_store %arg6[%c0_64, %c0_65], %76 {strides = array<i32>} : memref<8x32xf32, #tpu.memory_space<vmem>>, vector<1x32xf32>,
    %c13 = arith.constant 13 : index
    %78 = memref.load %arg0[%c13] : memref<16xi32, #tpu.memory_space<smem>>
    %79 = arith.index_cast %78 : i32 to index
    %c0_66 = arith.constant 0 : index
    %c0_67 = arith.constant 0 : index
    %80 = vector.load %arg1[%79, %c0_66, %c0_67] : memref<30x1x32xf32, #tpu.memory_space<vmem>>, vector<1x1x32xf32>
    %81 = vector.shape_cast %80 : vector<1x1x32xf32> to vector<1x32xf32>
    %c1_68 = arith.constant 1 : index
    %c0_69 = arith.constant 0 : index
    %82 = vector.load %arg6[%c1_68, %c0_69] : memref<8x32xf32, #tpu.memory_space<vmem>>, vector<1x32xf32>
    tpu.vector_store %arg6[%c1_68, %c0_69], %81 {strides = array<i32>} : memref<8x32xf32, #tpu.memory_space<vmem>>, vector<1x32xf32>,
    %c0_70 = arith.constant 0 : index
    %c0_71 = arith.constant 0 : index
    %83 = vector.load %arg6[%c0_70, %c0_71] : memref<8x32xf32, #tpu.memory_space<vmem>>, vector<8x32xf32>
    %cst_72 = arith.constant dense<0.000000e+00> : vector<8x32xf32>
    %84 = tpu.matmul %72, %0, %cst_72 {dimension_numbers = #tpu.dot_dimension_numbers<[1], [0], [0], [1], [0, 0, 1, 1], [], []>} : vector<8x32xf32>, vector<32x32xf32>, vector<8x32xf32> -> vector<8x32xf32>
    %85 = arith.addf %83, %84 : vector<8x32xf32>
    %86 = math.tanh %85 : vector<8x32xf32>
    %c6 = arith.constant 6 : index
    %87 = memref.load %arg0[%c6] : memref<16xi32, #tpu.memory_space<smem>>
    %88 = arith.index_cast %87 : i32 to index
    %c0_73 = arith.constant 0 : index
    %c0_74 = arith.constant 0 : index
    %89 = vector.load %arg1[%88, %c0_73, %c0_74] : memref<30x1x32xf32, #tpu.memory_space<vmem>>, vector<1x1x32xf32>
    %90 = vector.shape_cast %89 : vector<1x1x32xf32> to vector<1x32xf32>
    %c0_75 = arith.constant 0 : index
    %c0_76 = arith.constant 0 : index
    %91 = vector.load %arg6[%c0_75, %c0_76] : memref<8x32xf32, #tpu.memory_space<vmem>>, vector<1x32xf32>
    tpu.vector_store %arg6[%c0_75, %c0_76], %90 {strides = array<i32>} : memref<8x32xf32, #tpu.memory_space<vmem>>, vector<1x32xf32>,
    %c14 = arith.constant 14 : index
    %92 = memref.load %arg0[%c14] : memref<16xi32, #tpu.memory_space<smem>>
    %93 = arith.index_cast %92 : i32 to index
    %c0_77 = arith.constant 0 : index
    %c0_78 = arith.constant 0 : index
    %94 = vector.load %arg1[%93, %c0_77, %c0_78] : memref<30x1x32xf32, #tpu.memory_space<vmem>>, vector<1x1x32xf32>
    %95 = vector.shape_cast %94 : vector<1x1x32xf32> to vector<1x32xf32>
    %c1_79 = arith.constant 1 : index
    %c0_80 = arith.constant 0 : index
    %96 = vector.load %arg6[%c1_79, %c0_80] : memref<8x32xf32, #tpu.memory_space<vmem>>, vector<1x32xf32>
    tpu.vector_store %arg6[%c1_79, %c0_80], %95 {strides = array<i32>} : memref<8x32xf32, #tpu.memory_space<vmem>>, vector<1x32xf32>,
    %c0_81 = arith.constant 0 : index
    %c0_82 = arith.constant 0 : index
    %97 = vector.load %arg6[%c0_81, %c0_82] : memref<8x32xf32, #tpu.memory_space<vmem>>, vector<8x32xf32>
    %cst_83 = arith.constant dense<0.000000e+00> : vector<8x32xf32>
    %98 = tpu.matmul %86, %0, %cst_83 {dimension_numbers = #tpu.dot_dimension_numbers<[1], [0], [0], [1], [0, 0, 1, 1], [], []>} : vector<8x32xf32>, vector<32x32xf32>, vector<8x32xf32> -> vector<8x32xf32>
    %99 = arith.addf %97, %98 : vector<8x32xf32>
    %100 = math.tanh %99 : vector<8x32xf32>
    %c7 = arith.constant 7 : index
    %101 = memref.load %arg0[%c7] : memref<16xi32, #tpu.memory_space<smem>>
    %102 = arith.index_cast %101 : i32 to index
    %c0_84 = arith.constant 0 : index
    %c0_85 = arith.constant 0 : index
    %103 = vector.load %arg1[%102, %c0_84, %c0_85] : memref<30x1x32xf32, #tpu.memory_space<vmem>>, vector<1x1x32xf32>
    %104 = vector.shape_cast %103 : vector<1x1x32xf32> to vector<1x32xf32>
    %c0_86 = arith.constant 0 : index
    %c0_87 = arith.constant 0 : index
    %105 = vector.load %arg6[%c0_86, %c0_87] : memref<8x32xf32, #tpu.memory_space<vmem>>, vector<1x32xf32>
    tpu.vector_store %arg6[%c0_86, %c0_87], %104 {strides = array<i32>} : memref<8x32xf32, #tpu.memory_space<vmem>>, vector<1x32xf32>,
    %c15 = arith.constant 15 : index
    %106 = memref.load %arg0[%c15] : memref<16xi32, #tpu.memory_space<smem>>
    %107 = arith.index_cast %106 : i32 to index
    %c0_88 = arith.constant 0 : index
    %c0_89 = arith.constant 0 : index
    %108 = vector.load %arg1[%107, %c0_88, %c0_89] : memref<30x1x32xf32, #tpu.memory_space<vmem>>, vector<1x1x32xf32>
    %109 = vector.shape_cast %108 : vector<1x1x32xf32> to vector<1x32xf32>
    %c1_90 = arith.constant 1 : index
    %c0_91 = arith.constant 0 : index
    %110 = vector.load %arg6[%c1_90, %c0_91] : memref<8x32xf32, #tpu.memory_space<vmem>>, vector<1x32xf32>
    tpu.vector_store %arg6[%c1_90, %c0_91], %109 {strides = array<i32>} : memref<8x32xf32, #tpu.memory_space<vmem>>, vector<1x32xf32>,
    %c0_92 = arith.constant 0 : index
    %c0_93 = arith.constant 0 : index
    %111 = vector.load %arg6[%c0_92, %c0_93] : memref<8x32xf32, #tpu.memory_space<vmem>>, vector<8x32xf32>
    %cst_94 = arith.constant dense<0.000000e+00> : vector<8x32xf32>
    %112 = tpu.matmul %100, %0, %cst_94 {dimension_numbers = #tpu.dot_dimension_numbers<[1], [0], [0], [1], [0, 0, 1, 1], [], []>} : vector<8x32xf32>, vector<32x32xf32>, vector<8x32xf32> -> vector<8x32xf32>
    %113 = arith.addf %111, %112 : vector<8x32xf32>
    %114 = math.tanh %113 : vector<8x32xf32>
    %cst_95 = arith.constant dense<0.000000e+00> : vector<8x128xf32>
    %115 = tpu.matmul %114, %1, %cst_95 {dimension_numbers = #tpu.dot_dimension_numbers<[1], [0], [0], [1], [0, 0, 1, 1], [], []>} : vector<8x32xf32>, vector<32x128xf32>, vector<8x128xf32> -> vector<8x128xf32>
    %116 = vector.broadcast %2 : vector<1x128xf32> to vector<8x128xf32>
    %117 = arith.addf %115, %116 : vector<8x128xf32>
    %c0_96 = arith.constant 0 : index
    %c0_97 = arith.constant 0 : index
    %118 = vector.load %arg5[%c0_96, %c0_97] : memref<8x128xf32, #tpu.memory_space<vmem>>, vector<8x128xf32>
    tpu.vector_store %arg5[%c0_96, %c0_97], %117 {strides = array<i32>} : memref<8x128xf32, #tpu.memory_space<vmem>>, vector<8x128xf32>,
    return
  }
}

</mosaic_0001>

<llo_original>
// kernel: torch_model_forward.1
$region0: #{torch_model_forward.1}
  #allocation0 [shape = 'u32[]', space=smem, size = 0x4, offset = 0x4, fixed_abs, tag = 'smem constant byte address 0x4 - core index']
  #allocation1 [shape = 'u32[144,128]{1,0:T(1,128)}', space=vmem, size = 0x12000, scoped, tag = 'internal scratch']
  #allocation2 [shape = 'f32[8,32]{1,0:T(8,128)}', space=vmem, size = 0x1000, scoped, tag = 'scratch operand']
  #allocation3 [shape = 's32[1]{0}', space=sflag, size = 0x4, scoped, tag = 'scoped memory for torch_model_forward.1']
  #allocation4 [shape = 'u8[512]{0}', space=smem, size = 0x200, scoped, tag = 'prefetched SMEM operand 0']
  %s0 = inlined_call_operand.vmem [shape: s32[16], index: 0, kind: input, shape index: {}]
  %s1 = inlined_call_operand.hbm [shape: f32[30,1,32], index: 1, kind: input, shape index: {}]
  %s2 = inlined_call_operand.hbm [shape: f32[32,32], index: 2, kind: input, shape index: {}]
  %s3 = inlined_call_operand.hbm [shape: f32[32,128], index: 3, kind: input, shape index: {}]
  %s4 = inlined_call_operand.vmem [shape: f32[1,128], index: 4, kind: input, shape index: {}]
  %s5 = inlined_call_operand.vmem [shape: f32[8,128], index: 5, kind: output, shape index: {}]
  %s6 = sld [smem:[#allocation0]]
  $region38: #{torch_model_forward.1} parent=0
    _
  %s8 = ssub.s32 1, %s6
  %s9 = scalar_select 0, %s8, %s6
  %s10 = sshll.u32 %s0, 4
  %s11 = int_to_ptr.vmem [resolvable:$true] %s10
  %13 = dma.vmem_to_smem %s11, 16, [#allocation4], [#allocation3]
  %14 = dma.done [#allocation3], 16
  %15 = sfence
  $region1: #{torch_model_forward.1} parent=0
    #allocation5 [shape = 'u8[15360]{0}', space=vmem, size = 0x3c00, scoped, tag = 'input window, operand 1, single buffered']
    #allocation6 [shape = 's32[1]{0}', space=sflag, size = 0x4, scoped, tag = 'scoped memory for torch_model_forward.1']
    #allocation7 [shape = 'u8[16384]{0}', space=vmem, size = 0x4000, scoped, tag = 'input window, operand 2, single buffered']
    #allocation8 [shape = 's32[1]{0}', space=sflag, size = 0x4, scoped, tag = 'scoped memory for torch_model_forward.1']
    #allocation9 [shape = 'u8[16384]{0}', space=vmem, size = 0x4000, scoped, tag = 'input window, operand 3, single buffered']
    %16 = vsyncpa [#allocation6], 0
    %17 = vsyncpa [#allocation8], 0
    // Predicated region
    $region2: #{torch_model_forward.1} parent=1 // pred_check
      _
    $region3: #{torch_model_forward.1} parent=1 // pred_check_branch
      %19 = sbr.rel (0) target = $region5
    $region4: #{torch_model_forward.1} parent=1 // pred_region
      %s21 = ssub.s32 480, 480
      %22 = vsyncadd [#allocation6], %s21
      %s23 = sshll.u32 [#allocation5], 4
      %s24 = int_to_ptr.vmem [resolvable:$true] %s23
      %29 = dma.hbm_to_vmem [thread:$0]  %s1, 480, %s24, [#allocation6], 16, 16, 1
    $region5: #{torch_model_forward.1} parent=1 // pred_fallthru
      _
    // Predicated region
    $region6: #{torch_model_forward.1} parent=1 // pred_check
      _
    $region7: #{torch_model_forward.1} parent=1 // pred_check_branch
      %31 = sbr.rel (0) target = $region9
    $region8: #{torch_model_forward.1} parent=1 // pred_region
      %s33 = ssub.s32 512, 512
      %34 = vsyncadd [#allocation8], %s33
      %s35 = sshll.u32 [#allocation7], 4
      %s36 = int_to_ptr.vmem [resolvable:$true] %s35
      %41 = dma.hbm_to_vmem [thread:$0]  %s2, 512, %s36, [#allocation8], 128, 128, 8
    $region9: #{torch_model_forward.1} parent=1 // pred_fallthru
      _
    // Predicated region
    $region10: #{torch_model_forward.1} parent=1 // pred_check
      _
    $region11: #{torch_model_forward.1} parent=1 // pred_check_branch
      %43 = sbr.rel (0) target = $region13
    $region12: #{torch_model_forward.1} parent=1 // pred_region
      %s45 = ssub.s32 512, 512
      %46 = vsyncadd [#allocation8], %s45
      %s47 = sshll.u32 [#allocation9], 4
      %s48 = int_to_ptr.vmem [resolvable:$true] %s47
      %53 = dma.hbm_to_vmem [thread:$0]  %s3, 512, %s48, [#allocation8], 128, 128, 8
    $region13: #{torch_model_forward.1} parent=1 // pred_fallthru
      _
    // Predicated region
    $region14: #{torch_model_forward.1} parent=1 // pred_check
      _
    $region15: #{torch_model_forward.1} parent=1 // pred_check_branch
      %55 = sbr.rel (0) target = $region17
    $region16: #{torch_model_forward.1} parent=1 // pred_region
      _
    $region17: #{torch_model_forward.1} parent=1 // pred_fallthru
      _
    // Predicated region
    $region18: #{torch_model_forward.1} parent=1 // pred_check
      _
    $region19: #{torch_model_forward.1} parent=1 // pred_check_branch
      %57 = sbr.rel (0) target = $region21
    $region20: #{torch_model_forward.1} parent=1 // pred_region
      %58 = dma.done [#allocation6], 480
    $region21: #{torch_model_forward.1} parent=1 // pred_fallthru
      _
    // Predicated region
    $region22: #{torch_model_forward.1} parent=1 // pred_check
      _
    $region23: #{torch_model_forward.1} parent=1 // pred_check_branch
      %60 = sbr.rel (0) target = $region25
    $region24: #{torch_model_forward.1} parent=1 // pred_region
      %61 = dma.done [#allocation8], 512
    $region25: #{torch_model_forward.1} parent=1 // pred_fallthru
      _
    // Predicated region
    $region26: #{torch_model_forward.1} parent=1 // pred_check
      _
    $region27: #{torch_model_forward.1} parent=1 // pred_check_branch
      %63 = sbr.rel (0) target = $region29
    $region28: #{torch_model_forward.1} parent=1 // pred_region
      %64 = dma.done [#allocation8], 512
    $region29: #{torch_model_forward.1} parent=1 // pred_fallthru
      _
    %v65 = vld [vmem:[#allocation7] sm:$0xff]
    %v66 = vld [vmem:[#allocation7 + $0x8] sm:$0xff]
    %v67 = vld [vmem:[#allocation7 + $0x10] sm:$0xff]
    %v68 = vld [vmem:[#allocation7 + $0x18] sm:$0xff]
    %v69 = vld [vmem:[#allocation9] sm:$0xff]
    %v70 = vld [vmem:[#allocation9 + $0x8] sm:$0xff]
    %v71 = vld [vmem:[#allocation9 + $0x10] sm:$0xff]
    %v72 = vld [vmem:[#allocation9 + $0x18] sm:$0xff]
    %v73 = vld [vmem:[%s4] sm:$0x1]
    %vm74 = vcmask 261120
    %75 = vst.msk [vmem:[#allocation2] sm:$0xff] %vm74, 0.0
    %s76 = sld [smem:[#allocation4]]
    %s77 = scalar_lea.vmem [#allocation5], %s76
    %v78 = vld [vmem:[%s77] sm:$0x1]
    %vm79 = vcmask 253952
    %80 = vst.msk [vmem:[#allocation2] sm:$0x1] %vm79, %v78
    %s81 = sld [smem:[#allocation4 + $0x8]]
    %s82 = scalar_lea.vmem [#allocation5], %s81
    %v83 = vld [vmem:[%s82] sm:$0x1]
    %84 = vst.msk [vmem:[#allocation2 + $0x1] sm:$0x1] %vm79, %v83
    %v85 = vld [vmem:[#allocation2] sm:$0xff]
    %v86 = vtanh.pop %v85
    %s87 = sld [smem:[#allocation4 + $0x1]]
    %s88 = scalar_lea.vmem [#allocation5], %s87
    %v89 = vld [vmem:[%s88] sm:$0x1]
    %90 = vst.msk [vmem:[#allocation2] sm:$0x1] %vm79, %v89
    %s91 = sld [smem:[#allocation4 + $0x9]]
    %s92 = scalar_lea.vmem [#allocation5], %s91
    %v93 = vld [vmem:[%s92] sm:$0x1]
    %94 = vst.msk [vmem:[#allocation2 + $0x1] sm:$0x1] %vm79, %v93
    %v95 = vld [vmem:[#allocation2] sm:$0xff]
    %v97 = vsel %vm74, %v86, 0
    %99 = vmatprep.subr.mxu0 0.0
    %100 = vmatpush1.msra.mxu0 0.0
    %101 = vmatprep.subr.mxu0 0.0
    %102 = vmatpush1.msra.mxu0 0.0
    %103 = vmatprep.subr.mxu0 0.0
    %104 = vmatpush1.msra.mxu0 0.0
    %105 = vmatprep.subr.mxu0 0.0
    %106 = vmatpush1.msra.mxu0 0.0
    %107 = vmatprep.subr.mxu0 0.0
    %108 = vmatpush1.msra.mxu0 0.0
    %109 = vmatprep.subr.mxu0 0.0
    %110 = vmatpush1.msra.mxu0 0.0
    %111 = vmatprep.subr.mxu0 0.0
    %112 = vmatpush1.msra.mxu0 0.0
    %113 = vmatprep.subr.mxu0 0.0
    %114 = vmatpush1.msra.mxu0 0.0
    %115 = vmatprep.subr.mxu0 0.0
    %116 = vmatpush1.msra.mxu0 0.0
    %117 = vmatprep.subr.mxu0 0.0
    %118 = vmatpush1.msra.mxu0 0.0
    %119 = vmatprep.subr.mxu0 0.0
    %120 = vmatpush1.msra.mxu0 0.0
    %121 = vmatprep.subr.mxu0 0.0
    %122 = vmatpush1.msra.mxu0 0.0
    %123 = vmatprep.subr.mxu0 0.0
    %124 = vmatpush1.msra.mxu0 %v68
    %125 = vmatprep.subr.mxu0 0.0
    %126 = vmatpush1.msra.mxu0 %v67
    %127 = vmatprep.subr.mxu0 0.0
    %128 = vmatpush1.msra.mxu0 %v66
    %129 = vmatprep.subr.mxu0 0.0
    %130 = vmatpush1.msra.mxu0 %v65
    %131 = vmatprep.subr.mxu0 0.0
    %132 = vmatpush2.msra.mxu0 0.0
    %133 = vmatprep.subr.mxu0 0.0
    %134 = vmatpush2.msra.mxu0 0.0
    %135 = vmatprep.subr.mxu0 0.0
    %136 = vmatpush2.msra.mxu0 0.0
    %137 = vmatprep.subr.mxu0 0.0
    %138 = vmatpush2.msra.mxu0 0.0
    %139 = vmatprep.subr.mxu0 0.0
    %140 = vmatpush2.msra.mxu0 0.0
    %141 = vmatprep.subr.mxu0 0.0
    %142 = vmatpush2.msra.mxu0 0.0
    %143 = vmatprep.subr.mxu0 0.0
    %144 = vmatpush2.msra.mxu0 0.0
    %145 = vmatprep.subr.mxu0 0.0
    %146 = vmatpush2.msra.mxu0 0.0
    %147 = vmatprep.subr.mxu0 0.0
    %148 = vmatpush2.msra.mxu0 0.0
    %149 = vmatprep.subr.mxu0 0.0
    %150 = vmatpush2.msra.mxu0 0.0
    %151 = vmatprep.subr.mxu0 0.0
    %152 = vmatpush2.msra.mxu0 0.0
    %153 = vmatprep.subr.mxu0 0.0
    %154 = vmatpush2.msra.mxu0 0.0
    %155 = vmatprep.subr.mxu0 0.0
    %156 = vmatpush2.msra.mxu0 0.0
    %157 = vmatprep.subr.mxu0 0.0
    %158 = vmatpush2.msra.mxu0 0.0
    %159 = vmatprep.subr.mxu0 0.0
    %160 = vmatpush2.msra.mxu0 0.0
    %161 = vmatprep.subr.mxu0 0.0
    %162 = vmatpush2.msra.mxu0 0.0
    %163 = vmatprep.mubr.f32.mxu0 0.0
    %164 = vmatmul.mubr.f32.gmra.mxu0 %v97
    %v165 = vpop.f32.mrf.mxu0
    %v166 = vadd.f32 0.0, %v165
    %v167 = vpop.f32.mrf.mxu0
    %168 = vdwg.mxu0
    %v169 = vadd.f32 %v95, %v166
    %v170 = vtanh.pop %v169
    %s171 = sld [smem:[#allocation4 + $0x2]]
    %s172 = scalar_lea.vmem [#allocation5], %s171
    %v173 = vld [vmem:[%s172] sm:$0x1]
    %174 = vst.msk [vmem:[#allocation2] sm:$0x1] %vm79, %v173
    %s175 = sld [smem:[#allocation4 + $0xa]]
    %s176 = scalar_lea.vmem [#allocation5], %s175
    %v177 = vld [vmem:[%s176] sm:$0x1]
    %178 = vst.msk [vmem:[#allocation2 + $0x1] sm:$0x1] %vm79, %v177
    %v179 = vld [vmem:[#allocation2] sm:$0xff]
    %v181 = vsel %vm74, %v170, 0
    %183 = vmatprep.subr.mxu0 0.0
    %184 = vmatpush1.msra.mxu0 0.0
    %185 = vmatprep.subr.mxu0 0.0
    %186 = vmatpush1.msra.mxu0 0.0
    %187 = vmatprep.subr.mxu0 0.0
    %188 = vmatpush1.msra.mxu0 0.0
    %189 = vmatprep.subr.mxu0 0.0
    %190 = vmatpush1.msra.mxu0 0.0
    %191 = vmatprep.subr.mxu0 0.0
    %192 = vmatpush1.msra.mxu0 0.0
    %193 = vmatprep.subr.mxu0 0.0
    %194 = vmatpush1.msra.mxu0 0.0
    %195 = vmatprep.subr.mxu0 0.0
    %196 = vmatpush1.msra.mxu0 0.0
    %197 = vmatprep.subr.mxu0 0.0
    %198 = vmatpush1.msra.mxu0 0.0
    %199 = vmatprep.subr.mxu0 0.0
    %200 = vmatpush1.msra.mxu0 0.0
    %201 = vmatprep.subr.mxu0 0.0
    %202 = vmatpush1.msra.mxu0 0.0
    %203 = vmatprep.subr.mxu0 0.0
    %204 = vmatpush1.msra.mxu0 0.0
    %205 = vmatprep.subr.mxu0 0.0
    %206 = vmatpush1.msra.mxu0 0.0
    %207 = vmatprep.subr.mxu0 0.0
    %208 = vmatpush1.msra.mxu0 %v68
    %209 = vmatprep.subr.mxu0 0.0
    %210 = vmatpush1.msra.mxu0 %v67
    %211 = vmatprep.subr.mxu0 0.0
    %212 = vmatpush1.msra.mxu0 %v66
    %213 = vmatprep.subr.mxu0 0.0
    %214 = vmatpush1.msra.mxu0 %v65
    %215 = vmatprep.subr.mxu0 0.0
    %216 = vmatpush2.msra.mxu0 0.0
    %217 = vmatprep.subr.mxu0 0.0
    %218 = vmatpush2.msra.mxu0 0.0
    %219 = vmatprep.subr.mxu0 0.0
    %220 = vmatpush2.msra.mxu0 0.0
    %221 = vmatprep.subr.mxu0 0.0
    %222 = vmatpush2.msra.mxu0 0.0
    %223 = vmatprep.subr.mxu0 0.0
    %224 = vmatpush2.msra.mxu0 0.0
    %225 = vmatprep.subr.mxu0 0.0
    %226 = vmatpush2.msra.mxu0 0.0
    %227 = vmatprep.subr.mxu0 0.0
    %228 = vmatpush2.msra.mxu0 0.0
    %229 = vmatprep.subr.mxu0 0.0
    %230 = vmatpush2.msra.mxu0 0.0
    %231 = vmatprep.subr.mxu0 0.0
    %232 = vmatpush2.msra.mxu0 0.0
    %233 = vmatprep.subr.mxu0 0.0
    %234 = vmatpush2.msra.mxu0 0.0
    %235 = vmatprep.subr.mxu0 0.0
    %236 = vmatpush2.msra.mxu0 0.0
    %237 = vmatprep.subr.mxu0 0.0
    %238 = vmatpush2.msra.mxu0 0.0
    %239 = vmatprep.subr.mxu0 0.0
    %240 = vmatpush2.msra.mxu0 0.0
    %241 = vmatprep.subr.mxu0 0.0
    %242 = vmatpush2.msra.mxu0 0.0
    %243 = vmatprep.subr.mxu0 0.0
    %244 = vmatpush2.msra.mxu0 0.0
    %245 = vmatprep.subr.mxu0 0.0
    %246 = vmatpush2.msra.mxu0 0.0
    %247 = vmatprep.mubr.f32.mxu0 0.0
    %248 = vmatmul.mubr.f32.gmra.mxu0 %v181
    %v249 = vpop.f32.mrf.mxu0
    %v250 = vadd.f32 0.0, %v249
    %v251 = vpop.f32.mrf.mxu0
    %252 = vdwg.mxu0
    %v253 = vadd.f32 %v179, %v250
    %v254 = vtanh.pop %v253
    %s255 = sld [smem:[#allocation4 + $0x3]]
    %s256 = scalar_lea.vmem [#allocation5], %s255
    %v257 = vld [vmem:[%s256] sm:$0x1]
    %258 = vst.msk [vmem:[#allocation2] sm:$0x1] %vm79, %v257
    %s259 = sld [smem:[#allocation4 + $0xb]]
    %s260 = scalar_lea.vmem [#allocation5], %s259
    %v261 = vld [vmem:[%s260] sm:$0x1]
    %262 = vst.msk [vmem:[#allocation2 + $0x1] sm:$0x1] %vm79, %v261
    %v263 = vld [vmem:[#allocation2] sm:$0xff]
    %v265 = vsel %vm74, %v254, 0
    %267 = vmatprep.subr.mxu0 0.0
    %268 = vmatpush1.msra.mxu0 0.0
    %269 = vmatprep.subr.mxu0 0.0
    %270 = vmatpush1.msra.mxu0 0.0
    %271 = vmatprep.subr.mxu0 0.0
    %272 = vmatpush1.msra.mxu0 0.0
    %273 = vmatprep.subr.mxu0 0.0
    %274 = vmatpush1.msra.mxu0 0.0
    %275 = vmatprep.subr.mxu0 0.0
    %276 = vmatpush1.msra.mxu0 0.0
    %277 = vmatprep.subr.mxu0 0.0
    %278 = vmatpush1.msra.mxu0 0.0
    %279 = vmatprep.subr.mxu0 0.0
    %280 = vmatpush1.msra.mxu0 0.0
    %281 = vmatprep.subr.mxu0 0.0
    %282 = vmatpush1.msra.mxu0 0.0
    %283 = vmatprep.subr.mxu0 0.0
    %284 = vmatpush1.msra.mxu0 0.0
    %285 = vmatprep.subr.mxu0 0.0
    %286 = vmatpush1.msra.mxu0 0.0
    %287 = vmatprep.subr.mxu0 0.0
    %288 = vmatpush1.msra.mxu0 0.0
    %289 = vmatprep.subr.mxu0 0.0
    %290 = vmatpush1.msra.mxu0 0.0
    %291 = vmatprep.subr.mxu0 0.0
    %292 = vmatpush1.msra.mxu0 %v68
    %293 = vmatprep.subr.mxu0 0.0
    %294 = vmatpush1.msra.mxu0 %v67
    %295 = vmatprep.subr.mxu0 0.0
    %296 = vmatpush1.msra.mxu0 %v66
    %297 = vmatprep.subr.mxu0 0.0
    %298 = vmatpush1.msra.mxu0 %v65
    %299 = vmatprep.subr.mxu0 0.0
    %300 = vmatpush2.msra.mxu0 0.0
    %301 = vmatprep.subr.mxu0 0.0
    %302 = vmatpush2.msra.mxu0 0.0
    %303 = vmatprep.subr.mxu0 0.0
    %304 = vmatpush2.msra.mxu0 0.0
    %305 = vmatprep.subr.mxu0 0.0
    %306 = vmatpush2.msra.mxu0 0.0
    %307 = vmatprep.subr.mxu0 0.0
    %308 = vmatpush2.msra.mxu0 0.0
    %309 = vmatprep.subr.mxu0 0.0
    %310 = vmatpush2.msra.mxu0 0.0
    %311 = vmatprep.subr.mxu0 0.0
    %312 = vmatpush2.msra.mxu0 0.0
    %313 = vmatprep.subr.mxu0 0.0
    %314 = vmatpush2.msra.mxu0 0.0
    %315 = vmatprep.subr.mxu0 0.0
    %316 = vmatpush2.msra.mxu0 0.0
    %317 = vmatprep.subr.mxu0 0.0
    %318 = vmatpush2.msra.mxu0 0.0
    %319 = vmatprep.subr.mxu0 0.0
    %320 = vmatpush2.msra.mxu0 0.0
    %321 = vmatprep.subr.mxu0 0.0
    %322 = vmatpush2.msra.mxu0 0.0
    %323 = vmatprep.subr.mxu0 0.0
    %324 = vmatpush2.msra.mxu0 0.0
    %325 = vmatprep.subr.mxu0 0.0
    %326 = vmatpush2.msra.mxu0 0.0
    %327 = vmatprep.subr.mxu0 0.0
    %328 = vmatpush2.msra.mxu0 0.0
    %329 = vmatprep.subr.mxu0 0.0
    %330 = vmatpush2.msra.mxu0 0.0
    %331 = vmatprep.mubr.f32.mxu0 0.0
    %332 = vmatmul.mubr.f32.gmra.mxu0 %v265
    %v333 = vpop.f32.mrf.mxu0
    %v334 = vadd.f32 0.0, %v333
    %v335 = vpop.f32.mrf.mxu0
    %336 = vdwg.mxu0
    %v337 = vadd.f32 %v263, %v334
    %v338 = vtanh.pop %v337
    %s339 = sld [smem:[#allocation4 + $0x4]]
    %s340 = scalar_lea.vmem [#allocation5], %s339
    %v341 = vld [vmem:[%s340] sm:$0x1]
    %342 = vst.msk [vmem:[#allocation2] sm:$0x1] %vm79, %v341
    %s343 = sld [smem:[#allocation4 + $0xc]]
    %s344 = scalar_lea.vmem [#allocation5], %s343
    %v345 = vld [vmem:[%s344] sm:$0x1]
    %346 = vst.msk [vmem:[#allocation2 + $0x1] sm:$0x1] %vm79, %v345
    %v347 = vld [vmem:[#allocation2] sm:$0xff]
    %v349 = vsel %vm74, %v338, 0
    %351 = vmatprep.subr.mxu0 0.0
    %352 = vmatpush1.msra.mxu0 0.0
    %353 = vmatprep.subr.mxu0 0.0
    %354 = vmatpush1.msra.mxu0 0.0
    %355 = vmatprep.subr.mxu0 0.0
    %356 = vmatpush1.msra.mxu0 0.0
    %357 = vmatprep.subr.mxu0 0.0
    %358 = vmatpush1.msra.mxu0 0.0
    %359 = vmatprep.subr.mxu0 0.0
    %360 = vmatpush1.msra.mxu0 0.0
    %361 = vmatprep.subr.mxu0 0.0
    %362 = vmatpush1.msra.mxu0 0.0
    %363 = vmatprep.subr.mxu0 0.0
    %364 = vmatpush1.msra.mxu0 0.0
    %365 = vmatprep.subr.mxu0 0.0
    %366 = vmatpush1.msra.mxu0 0.0
    %367 = vmatprep.subr.mxu0 0.0
    %368 = vmatpush1.msra.mxu0 0.0
    %369 = vmatprep.subr.mxu0 0.0
    %370 = vmatpush1.msra.mxu0 0.0
    %371 = vmatprep.subr.mxu0 0.0
    %372 = vmatpush1.msra.mxu0 0.0
    %373 = vmatprep.subr.mxu0 0.0
    %374 = vmatpush1.msra.mxu0 0.0
    %375 = vmatprep.subr.mxu0 0.0
    %376 = vmatpush1.msra.mxu0 %v68
    %377 = vmatprep.subr.mxu0 0.0
    %378 = vmatpush1.msra.mxu0 %v67
    %379 = vmatprep.subr.mxu0 0.0
    %380 = vmatpush1.msra.mxu0 %v66
    %381 = vmatprep.subr.mxu0 0.0
    %382 = vmatpush1.msra.mxu0 %v65
    %383 = vmatprep.subr.mxu0 0.0
    %384 = vmatpush2.msra.mxu0 0.0
    %385 = vmatprep.subr.mxu0 0.0
    %386 = vmatpush2.msra.mxu0 0.0
    %387 = vmatprep.subr.mxu0 0.0
    %388 = vmatpush2.msra.mxu0 0.0
    %389 = vmatprep.subr.mxu0 0.0
    %390 = vmatpush2.msra.mxu0 0.0
    %391 = vmatprep.subr.mxu0 0.0
    %392 = vmatpush2.msra.mxu0 0.0
    %393 = vmatprep.subr.mxu0 0.0
    %394 = vmatpush2.msra.mxu0 0.0
    %395 = vmatprep.subr.mxu0 0.0
    %396 = vmatpush2.msra.mxu0 0.0
    %397 = vmatprep.subr.mxu0 0.0
    %398 = vmatpush2.msra.mxu0 0.0
    %399 = vmatprep.subr.mxu0 0.0
    %400 = vmatpush2.msra.mxu0 0.0
    %401 = vmatprep.subr.mxu0 0.0
    %402 = vmatpush2.msra.mxu0 0.0
    %403 = vmatprep.subr.mxu0 0.0
    %404 = vmatpush2.msra.mxu0 0.0
    %405 = vmatprep.subr.mxu0 0.0
    %406 = vmatpush2.msra.mxu0 0.0
    %407 = vmatprep.subr.mxu0 0.0
    %408 = vmatpush2.msra.mxu0 0.0
    %409 = vmatprep.subr.mxu0 0.0
    %410 = vmatpush2.msra.mxu0 0.0
    %411 = vmatprep.subr.mxu0 0.0
    %412 = vmatpush2.msra.mxu0 0.0
    %413 = vmatprep.subr.mxu0 0.0
    %414 = vmatpush2.msra.mxu0 0.0
    %415 = vmatprep.mubr.f32.mxu0 0.0
    %416 = vmatmul.mubr.f32.gmra.mxu0 %v349
    %v417 = vpop.f32.mrf.mxu0
    %v418 = vadd.f32 0.0, %v417
    %v419 = vpop.f32.mrf.mxu0
    %420 = vdwg.mxu0
    %v421 = vadd.f32 %v347, %v418
    %v422 = vtanh.pop %v421
    %s423 = sld [smem:[#allocation4 + $0x5]]
    %s424 = scalar_lea.vmem [#allocation5], %s423
    %v425 = vld [vmem:[%s424] sm:$0x1]
    %426 = vst.msk [vmem:[#allocation2] sm:$0x1] %vm79, %v425
    %s427 = sld [smem:[#allocation4 + $0xd]]
    %s428 = scalar_lea.vmem [#allocation5], %s427
    %v429 = vld [vmem:[%s428] sm:$0x1]
    %430 = vst.msk [vmem:[#allocation2 + $0x1] sm:$0x1] %vm79, %v429
    %v431 = vld [vmem:[#allocation2] sm:$0xff]
    %v433 = vsel %vm74, %v422, 0
    %435 = vmatprep.subr.mxu0 0.0
    %436 = vmatpush1.msra.mxu0 0.0
    %437 = vmatprep.subr.mxu0 0.0
    %438 = vmatpush1.msra.mxu0 0.0
    %439 = vmatprep.subr.mxu0 0.0
    %440 = vmatpush1.msra.mxu0 0.0
    %441 = vmatprep.subr.mxu0 0.0
    %442 = vmatpush1.msra.mxu0 0.0
    %443 = vmatprep.subr.mxu0 0.0
    %444 = vmatpush1.msra.mxu0 0.0
    %445 = vmatprep.subr.mxu0 0.0
    %446 = vmatpush1.msra.mxu0 0.0
    %447 = vmatprep.subr.mxu0 0.0
    %448 = vmatpush1.msra.mxu0 0.0
    %449 = vmatprep.subr.mxu0 0.0
    %450 = vmatpush1.msra.mxu0 0.0
    %451 = vmatprep.subr.mxu0 0.0
    %452 = vmatpush1.msra.mxu0 0.0
    %453 = vmatprep.subr.mxu0 0.0
    %454 = vmatpush1.msra.mxu0 0.0
    %455 = vmatprep.subr.mxu0 0.0
    %456 = vmatpush1.msra.mxu0 0.0
    %457 = vmatprep.subr.mxu0 0.0
    %458 = vmatpush1.msra.mxu0 0.0
    %459 = vmatprep.subr.mxu0 0.0
    %460 = vmatpush1.msra.mxu0 %v68
    %461 = vmatprep.subr.mxu0 0.0
    %462 = vmatpush1.msra.mxu0 %v67
    %463 = vmatprep.subr.mxu0 0.0
    %464 = vmatpush1.msra.mxu0 %v66
    %465 = vmatprep.subr.mxu0 0.0
    %466 = vmatpush1.msra.mxu0 %v65
    %467 = vmatprep.subr.mxu0 0.0
    %468 = vmatpush2.msra.mxu0 0.0
    %469 = vmatprep.subr.mxu0 0.0
    %470 = vmatpush2.msra.mxu0 0.0
    %471 = vmatprep.subr.mxu0 0.0
    %472 = vmatpush2.msra.mxu0 0.0
    %473 = vmatprep.subr.mxu0 0.0
    %474 = vmatpush2.msra.mxu0 0.0
    %475 = vmatprep.subr.mxu0 0.0
    %476 = vmatpush2.msra.mxu0 0.0
    %477 = vmatprep.subr.mxu0 0.0
    %478 = vmatpush2.msra.mxu0 0.0
    %479 = vmatprep.subr.mxu0 0.0
    %480 = vmatpush2.msra.mxu0 0.0
    %481 = vmatprep.subr.mxu0 0.0
    %482 = vmatpush2.msra.mxu0 0.0
    %483 = vmatprep.subr.mxu0 0.0
    %484 = vmatpush2.msra.mxu0 0.0
    %485 = vmatprep.subr.mxu0 0.0
    %486 = vmatpush2.msra.mxu0 0.0
    %487 = vmatprep.subr.mxu0 0.0
    %488 = vmatpush2.msra.mxu0 0.0
    %489 = vmatprep.subr.mxu0 0.0
    %490 = vmatpush2.msra.mxu0 0.0
    %491 = vmatprep.subr.mxu0 0.0
    %492 = vmatpush2.msra.mxu0 0.0
    %493 = vmatprep.subr.mxu0 0.0
    %494 = vmatpush2.msra.mxu0 0.0
    %495 = vmatprep.subr.mxu0 0.0
    %496 = vmatpush2.msra.mxu0 0.0
    %497 = vmatprep.subr.mxu0 0.0
    %498 = vmatpush2.msra.mxu0 0.0
    %499 = vmatprep.mubr.f32.mxu0 0.0
    %500 = vmatmul.mubr.f32.gmra.mxu0 %v433
    %v501 = vpop.f32.mrf.mxu0
    %v502 = vadd.f32 0.0, %v501
    %v503 = vpop.f32.mrf.mxu0
    %504 = vdwg.mxu0
    %v505 = vadd.f32 %v431, %v502
    %v506 = vtanh.pop %v505
    %s507 = sld [smem:[#allocation4 + $0x6]]
    %s508 = scalar_lea.vmem [#allocation5], %s507
    %v509 = vld [vmem:[%s508] sm:$0x1]
    %510 = vst.msk [vmem:[#allocation2] sm:$0x1] %vm79, %v509
    %s511 = sld [smem:[#allocation4 + $0xe]]
    %s512 = scalar_lea.vmem [#allocation5], %s511
    %v513 = vld [vmem:[%s512] sm:$0x1]
    %514 = vst.msk [vmem:[#allocation2 + $0x1] sm:$0x1] %vm79, %v513
    %v515 = vld [vmem:[#allocation2] sm:$0xff]
    %v517 = vsel %vm74, %v506, 0
    %519 = vmatprep.subr.mxu0 0.0
    %520 = vmatpush1.msra.mxu0 0.0
    %521 = vmatprep.subr.mxu0 0.0
    %522 = vmatpush1.msra.mxu0 0.0
    %523 = vmatprep.subr.mxu0 0.0
    %524 = vmatpush1.msra.mxu0 0.0
    %525 = vmatprep.subr.mxu0 0.0
    %526 = vmatpush1.msra.mxu0 0.0
    %527 = vmatprep.subr.mxu0 0.0
    %528 = vmatpush1.msra.mxu0 0.0
    %529 = vmatprep.subr.mxu0 0.0
    %530 = vmatpush1.msra.mxu0 0.0
    %531 = vmatprep.subr.mxu0 0.0
    %532 = vmatpush1.msra.mxu0 0.0
    %533 = vmatprep.subr.mxu0 0.0
    %534 = vmatpush1.msra.mxu0 0.0
    %535 = vmatprep.subr.mxu0 0.0
    %536 = vmatpush1.msra.mxu0 0.0
    %537 = vmatprep.subr.mxu0 0.0
    %538 = vmatpush1.msra.mxu0 0.0
    %539 = vmatprep.subr.mxu0 0.0
    %540 = vmatpush1.msra.mxu0 0.0
    %541 = vmatprep.subr.mxu0 0.0
    %542 = vmatpush1.msra.mxu0 0.0
    %543 = vmatprep.subr.mxu0 0.0
    %544 = vmatpush1.msra.mxu0 %v68
    %545 = vmatprep.subr.mxu0 0.0
    %546 = vmatpush1.msra.mxu0 %v67
    %547 = vmatprep.subr.mxu0 0.0
    %548 = vmatpush1.msra.mxu0 %v66
    %549 = vmatprep.subr.mxu0 0.0
    %550 = vmatpush1.msra.mxu0 %v65
    %551 = vmatprep.subr.mxu0 0.0
    %552 = vmatpush2.msra.mxu0 0.0
    %553 = vmatprep.subr.mxu0 0.0
    %554 = vmatpush2.msra.mxu0 0.0
    %555 = vmatprep.subr.mxu0 0.0
    %556 = vmatpush2.msra.mxu0 0.0
    %557 = vmatprep.subr.mxu0 0.0
    %558 = vmatpush2.msra.mxu0 0.0
    %559 = vmatprep.subr.mxu0 0.0
    %560 = vmatpush2.msra.mxu0 0.0
    %561 = vmatprep.subr.mxu0 0.0
    %562 = vmatpush2.msra.mxu0 0.0
    %563 = vmatprep.subr.mxu0 0.0
    %564 = vmatpush2.msra.mxu0 0.0
    %565 = vmatprep.subr.mxu0 0.0
    %566 = vmatpush2.msra.mxu0 0.0
    %567 = vmatprep.subr.mxu0 0.0
    %568 = vmatpush2.msra.mxu0 0.0
    %569 = vmatprep.subr.mxu0 0.0
    %570 = vmatpush2.msra.mxu0 0.0
    %571 = vmatprep.subr.mxu0 0.0
    %572 = vmatpush2.msra.mxu0 0.0
    %573 = vmatprep.subr.mxu0 0.0
    %574 = vmatpush2.msra.mxu0 0.0
    %575 = vmatprep.subr.mxu0 0.0
    %576 = vmatpush2.msra.mxu0 0.0
    %577 = vmatprep.subr.mxu0 0.0
    %578 = vmatpush2.msra.mxu0 0.0
    %579 = vmatprep.subr.mxu0 0.0
    %580 = vmatpush2.msra.mxu0 0.0
    %581 = vmatprep.subr.mxu0 0.0
    %582 = vmatpush2.msra.mxu0 0.0
    %583 = vmatprep.mubr.f32.mxu0 0.0
    %584 = vmatmul.mubr.f32.gmra.mxu0 %v517
    %v585 = vpop.f32.mrf.mxu0
    %v586 = vadd.f32 0.0, %v585
    %v587 = vpop.f32.mrf.mxu0
    %588 = vdwg.mxu0
    %v589 = vadd.f32 %v515, %v586
    %v590 = vtanh.pop %v589
    %s591 = sld [smem:[#allocation4 + $0x7]]
    %s592 = scalar_lea.vmem [#allocation5], %s591
    %v593 = vld [vmem:[%s592] sm:$0x1]
    %594 = vst.msk [vmem:[#allocation2] sm:$0x1] %vm79, %v593
    %s595 = sld [smem:[#allocation4 + $0xf]]
    %s596 = scalar_lea.vmem [#allocation5], %s595
    %v597 = vld [vmem:[%s596] sm:$0x1]
    %598 = vst.msk [vmem:[#allocation2 + $0x1] sm:$0x1] %vm79, %v597
    %v599 = vld [vmem:[#allocation2] sm:$0xff]
    %v601 = vsel %vm74, %v590, 0
    %603 = vmatprep.subr.mxu0 0.0
    %604 = vmatpush1.msra.mxu0 0.0
    %605 = vmatprep.subr.mxu0 0.0
    %606 = vmatpush1.msra.mxu0 0.0
    %607 = vmatprep.subr.mxu0 0.0
    %608 = vmatpush1.msra.mxu0 0.0
    %609 = vmatprep.subr.mxu0 0.0
    %610 = vmatpush1.msra.mxu0 0.0
    %611 = vmatprep.subr.mxu0 0.0
    %612 = vmatpush1.msra.mxu0 0.0
    %613 = vmatprep.subr.mxu0 0.0
    %614 = vmatpush1.msra.mxu0 0.0
    %615 = vmatprep.subr.mxu0 0.0
    %616 = vmatpush1.msra.mxu0 0.0
    %617 = vmatprep.subr.mxu0 0.0
    %618 = vmatpush1.msra.mxu0 0.0
    %619 = vmatprep.subr.mxu0 0.0
    %620 = vmatpush1.msra.mxu0 0.0
    %621 = vmatprep.subr.mxu0 0.0
    %622 = vmatpush1.msra.mxu0 0.0
    %623 = vmatprep.subr.mxu0 0.0
    %624 = vmatpush1.msra.mxu0 0.0
    %625 = vmatprep.subr.mxu0 0.0
    %626 = vmatpush1.msra.mxu0 0.0
    %627 = vmatprep.subr.mxu0 0.0
    %628 = vmatpush1.msra.mxu0 %v68
    %629 = vmatprep.subr.mxu0 0.0
    %630 = vmatpush1.msra.mxu0 %v67
    %631 = vmatprep.subr.mxu0 0.0
    %632 = vmatpush1.msra.mxu0 %v66
    %633 = vmatprep.subr.mxu0 0.0
    %634 = vmatpush1.msra.mxu0 %v65
    %635 = vmatprep.subr.mxu0 0.0
    %636 = vmatpush2.msra.mxu0 0.0
    %637 = vmatprep.subr.mxu0 0.0
    %638 = vmatpush2.msra.mxu0 0.0
    %639 = vmatprep.subr.mxu0 0.0
    %640 = vmatpush2.msra.mxu0 0.0
    %641 = vmatprep.subr.mxu0 0.0
    %642 = vmatpush2.msra.mxu0 0.0
    %643 = vmatprep.subr.mxu0 0.0
    %644 = vmatpush2.msra.mxu0 0.0
    %645 = vmatprep.subr.mxu0 0.0
    %646 = vmatpush2.msra.mxu0 0.0
    %647 = vmatprep.subr.mxu0 0.0
    %648 = vmatpush2.msra.mxu0 0.0
    %649 = vmatprep.subr.mxu0 0.0
    %650 = vmatpush2.msra.mxu0 0.0
    %651 = vmatprep.subr.mxu0 0.0
    %652 = vmatpush2.msra.mxu0 0.0
    %653 = vmatprep.subr.mxu0 0.0
    %654 = vmatpush2.msra.mxu0 0.0
    %655 = vmatprep.subr.mxu0 0.0
    %656 = vmatpush2.msra.mxu0 0.0
    %657 = vmatprep.subr.mxu0 0.0
    %658 = vmatpush2.msra.mxu0 0.0
    %659 = vmatprep.subr.mxu0 0.0
    %660 = vmatpush2.msra.mxu0 0.0
    %661 = vmatprep.subr.mxu0 0.0
    %662 = vmatpush2.msra.mxu0 0.0
    %663 = vmatprep.subr.mxu0 0.0
    %664 = vmatpush2.msra.mxu0 0.0
    %665 = vmatprep.subr.mxu0 0.0
    %666 = vmatpush2.msra.mxu0 0.0
    %667 = vmatprep.mubr.f32.mxu0 0.0
    %668 = vmatmul.mubr.f32.gmra.mxu0 %v601
    %v669 = vpop.f32.mrf.mxu0
    %v670 = vadd.f32 0.0, %v669
    %v671 = vpop.f32.mrf.mxu0
    %672 = vdwg.mxu0
    %v673 = vadd.f32 %v599, %v670
    %v674 = vtanh.pop %v673
    %v676 = vlaneseq
    %v677 = vshrl.u32 %v676, 7
    %v678 = vsub.s32 0, %v677
    %v679 = vrot.slane %v73, %v678
    %v682 = vsel %vm74, %v674, 0
    %684 = vmatprep.subr.mxu0 0.0
    %685 = vmatpush1.msra.mxu0 0.0
    %686 = vmatprep.subr.mxu0 0.0
    %687 = vmatpush1.msra.mxu0 0.0
    %688 = vmatprep.subr.mxu0 0.0
    %689 = vmatpush1.msra.mxu0 0.0
    %690 = vmatprep.subr.mxu0 0.0
    %691 = vmatpush1.msra.mxu0 0.0
    %692 = vmatprep.subr.mxu0 0.0
    %693 = vmatpush1.msra.mxu0 0.0
    %694 = vmatprep.subr.mxu0 0.0
    %695 = vmatpush1.msra.mxu0 0.0
    %696 = vmatprep.subr.mxu0 0.0
    %697 = vmatpush1.msra.mxu0 0.0
    %698 = vmatprep.subr.mxu0 0.0
    %699 = vmatpush1.msra.mxu0 0.0
    %700 = vmatprep.subr.mxu0 0.0
    %701 = vmatpush1.msra.mxu0 0.0
    %702 = vmatprep.subr.mxu0 0.0
    %703 = vmatpush1.msra.mxu0 0.0
    %704 = vmatprep.subr.mxu0 0.0
    %705 = vmatpush1.msra.mxu0 0.0
    %706 = vmatprep.subr.mxu0 0.0
    %707 = vmatpush1.msra.mxu0 0.0
    %708 = vmatprep.subr.mxu0 0.0
    %709 = vmatpush1.msra.mxu0 %v72
    %710 = vmatprep.subr.mxu0 0.0
    %711 = vmatpush1.msra.mxu0 %v71
    %712 = vmatprep.subr.mxu0 0.0
    %713 = vmatpush1.msra.mxu0 %v70
    %714 = vmatprep.subr.mxu0 0.0
    %715 = vmatpush1.msra.mxu0 %v69
    %716 = vmatprep.subr.mxu0 0.0
    %717 = vmatpush2.msra.mxu0 0.0
    %718 = vmatprep.subr.mxu0 0.0
    %719 = vmatpush2.msra.mxu0 0.0
    %720 = vmatprep.subr.mxu0 0.0
    %721 = vmatpush2.msra.mxu0 0.0
    %722 = vmatprep.subr.mxu0 0.0
    %723 = vmatpush2.msra.mxu0 0.0
    %724 = vmatprep.subr.mxu0 0.0
    %725 = vmatpush2.msra.mxu0 0.0
    %726 = vmatprep.subr.mxu0 0.0
    %727 = vmatpush2.msra.mxu0 0.0
    %728 = vmatprep.subr.mxu0 0.0
    %729 = vmatpush2.msra.mxu0 0.0
    %730 = vmatprep.subr.mxu0 0.0
    %731 = vmatpush2.msra.mxu0 0.0
    %732 = vmatprep.subr.mxu0 0.0
    %733 = vmatpush2.msra.mxu0 0.0
    %734 = vmatprep.subr.mxu0 0.0
    %735 = vmatpush2.msra.mxu0 0.0
    %736 = vmatprep.subr.mxu0 0.0
    %737 = vmatpush2.msra.mxu0 0.0
    %738 = vmatprep.subr.mxu0 0.0
    %739 = vmatpush2.msra.mxu0 0.0
    %740 = vmatprep.subr.mxu0 0.0
    %741 = vmatpush2.msra.mxu0 0.0
    %742 = vmatprep.subr.mxu0 0.0
    %743 = vmatpush2.msra.mxu0 0.0
    %744 = vmatprep.subr.mxu0 0.0
    %745 = vmatpush2.msra.mxu0 0.0
    %746 = vmatprep.subr.mxu0 0.0
    %747 = vmatpush2.msra.mxu0 0.0
    %748 = vmatprep.mubr.f32.mxu0 0.0
    %749 = vmatmul.mubr.f32.gmra.mxu0 %v682
    %v750 = vpop.f32.mrf.mxu0
    %v751 = vadd.f32 %v679, %v750
    %v752 = vpop.f32.mrf.mxu0
    %753 = vdwg.mxu0
    %754 = vst [vmem:[%s5] sm:$0xff] %v751
    // Predicated region
    $region30: #{torch_model_forward.1} parent=1 // pred_check
      _
    $region31: #{torch_model_forward.1} parent=1 // pred_check_branch
      %756 = sbr.rel (0) target = $region33
    $region32: #{torch_model_forward.1} parent=1 // pred_region
      _
    $region33: #{torch_model_forward.1} parent=1 // pred_fallthru
      _
    // Predicated region
    $region34: #{torch_model_forward.1} parent=1 // pred_check
      _
    $region35: #{torch_model_forward.1} parent=1 // pred_check_branch
      %758 = sbr.rel (0) target = $region37
    $region36: #{torch_model_forward.1} parent=1 // pred_region
      _
    $region37: #{torch_model_forward.1} parent=1 // pred_fallthru
      _
    %759 = vsyncpa [#allocation6], 1
    %760 = vsyncpa [#allocation8], 1

</llo_original>
